<compile_context>
chip_gen: v7x
topology: tpu7x:2x2x1
jax: 0.10.0
libtpu: 0.0.40
codegen_flags: <defaults>
</compile_context>

<pallas_src>
import jax
import jax.numpy as jnp
from jax.experimental import pallas as pl
from jax.experimental.pallas import tpu as pltpu

DROPOUT_P = 0.0  # dropout_p is an undefined global in the reference script; treated as 0.0
# TODO(synk): for a non-zero dropout_p, seed with pltpu.prng_seed and mask the unnormalized
#             probabilities with pltpu.stateful_bernoulli before the PV matmul.


def _flash_attn_kernel(inv_ref, q_ref, k_ref, v_ref, o_ref, m_sc, l_sc, acc_sc):
    # inv_ref : SMEM (1, 1) scalar   -- inv_scale_factor
    # q_ref   : VMEM (tq, D)         -- batch dim squeezed out by the BlockSpec
    # k_ref   : VMEM (tk, D)
    # v_ref   : VMEM (tk, D)
    # o_ref   : VMEM (tq, D)
    # m_sc    : VMEM (tq, 1) f32     -- running row max
    # l_sc    : VMEM (tq, 1) f32     -- running softmax denominator
    # acc_sc  : VMEM (tq, D) f32     -- unnormalized output accumulator
    ki = pl.program_id(2)

    @pl.when(ki == 0)
    def _init():
        m_sc[...] = jnp.full_like(m_sc, -jnp.inf)
        l_sc[...] = jnp.zeros_like(l_sc)
        acc_sc[...] = jnp.zeros_like(acc_sc)

    # Fold the scale into q: tq*D multiplies instead of tq*tk per score block.
    scale = 1.0 / inv_ref[0, 0]
    q_s = (q_ref[...] * scale).astype(jnp.bfloat16)

    # s = (q / inv) @ k^T -> (tq, tk); bf16 MXU operands, f32 accumulation.
    s = jax.lax.dot_general(
        q_s, k_ref[...].astype(jnp.bfloat16),
        (((1,), (1,)), ((), ())),
        preferred_element_type=jnp.float32,
    )

    # Online (streaming) softmax update; element-wise math kept in f32.
    m_prev = m_sc[...]
    m_new = jnp.maximum(m_prev, jnp.max(s, axis=-1, keepdims=True))
    alpha = jnp.exp(m_prev - m_new)                   # = 0 on the first k tile
    p = jnp.exp(s - m_new)
    l_sc[...] = alpha * l_sc[...] + jnp.sum(p, axis=-1, keepdims=True)
    acc_sc[...] = alpha * acc_sc[...] + jnp.dot(
        p.astype(jnp.bfloat16), v_ref[...].astype(jnp.bfloat16),
        preferred_element_type=jnp.float32,
    )
    m_sc[...] = m_new

    # dropout with p = 0.0 is the identity (see DROPOUT_P above).

    @pl.when(ki == pl.num_programs(2) - 1)
    def _finalize():
        # Deferred normalization: one multiply on the (tq, D) accumulator; the approx
        # reciprocal runs on the otherwise-idle EUP slot.
        o_ref[...] = (
            acc_sc[...] * pl.reciprocal(l_sc[...], approx=True)
        ).astype(o_ref.dtype)


def _pick_q_tile(Sq, B):
    # Prefer 128 when B == 1 so B * n_q >= 2 can feed both v7x TensorCores; 256 otherwise.
    pref = 128 if B == 1 else 256
    if Sq <= pref:
        return Sq            # block == full dim: always layout-legal, single block
    return pref              # multiple of 8; ragged last block handled via pl.cdiv


def _pick_k_tile(Sk, pref=512):
    # The key axis must divide exactly (a ragged key block would add fake keys to the
    # softmax), so pick the largest multiple-of-8 tile <= pref that divides Sk.
    if Sk <= pref:
        return Sk
    for t in range(pref, 7, -8):
        if Sk % t == 0:
            return t
    return Sk
    # TODO(synk): for large Sk not divisible by any multiple-of-8 tile, mask the ragged
    #             key block with an iota-based -inf mask instead of a whole-Sk block.


def attention(q, k, v, inv_scale_factor):
    """q: (B, Sq, D), k: (B, Sk, D), v: (B, Sk, D), inv_scale_factor: (1, 1)."""
    B, Sq, D = q.shape
    _, Sk, _ = k.shape

    tq = _pick_q_tile(Sq, B)
    tk = _pick_k_tile(Sk)
    n_q = pl.cdiv(Sq, tq)
    n_k = Sk // tk

    grid_spec = pltpu.PrefetchScalarGridSpec(
        num_scalar_prefetch=0,
        grid=(B, n_q, n_k),
        in_specs=[
            pl.BlockSpec(memory_space=pltpu.SMEM),                    # inv_scale_factor
            pl.BlockSpec((None, tq, D), lambda b, i, j: (b, i, 0)),   # q  (batch squeezed)
            pl.BlockSpec((None, tk, D), lambda b, i, j: (b, j, 0)),   # k
            pl.BlockSpec((None, tk, D), lambda b, i, j: (b, j, 0)),   # v
        ],
        out_specs=pl.BlockSpec((None, tq, D), lambda b, i, j: (b, i, 0)),
        scratch_shapes=[
            pltpu.VMEM((tq, 1), jnp.float32),   # running max
            pltpu.VMEM((tq, 1), jnp.float32),   # running denominator
            pltpu.VMEM((tq, D), jnp.float32),   # output accumulator
        ],
    )

    cost = pl.CostEstimate(
        flops=4 * B * Sq * Sk * D,                 # QK^T + PV matmuls
        transcendentals=B * Sq * Sk,               # exp
        bytes_accessed=4 * (q.size + k.size + v.size + B * Sq * D),
    )

    return pl.pallas_call(
        _flash_attn_kernel,
        out_shape=jax.ShapeDtypeStruct((B, Sq, D), q.dtype),
        grid_spec=grid_spec,
        compiler_params=pltpu.CompilerParams(
            dimension_semantics=("parallel", "parallel", "arbitrary"),
        ),
        cost_estimate=cost,
    )(inv_scale_factor, q, k, v)


if __name__ == "__main__":
    key = jax.random.PRNGKey(0)
    k1, k2, k3, k4 = jax.random.split(key, 4)

    # Shapes consistent with the reference module: q (1,2,512), k/v (1,4,512)
    B, Sq, Sk, D = 1, 2, 4, 512
    q = jax.random.normal(k1, (B, Sq, D), dtype=jnp.float32)
    k = jax.random.normal(k2, (B, Sk, D), dtype=jnp.float32)
    v = jax.random.normal(k3, (B, Sk, D), dtype=jnp.float32)
    # torch.randn(1,1) analogue; kept away from ~0 (and >= 2) so the division — and the
    # bf16-vs-f32 comparison below — are well-behaved.
    inv_scale_factor = jnp.abs(jax.random.normal(k4, (1, 1), dtype=jnp.float32)) + 2.0

    out = attention(q, k, v, inv_scale_factor)
    jax.block_until_ready(out)

    # Pure-JAX reference (exact f32). Tolerance accounts for the bf16 MXU operands in
    # both matmuls and the approx EUP reciprocal used for the softmax denominator.
    prec = jax.lax.Precision.HIGHEST
    ref_qk = jnp.einsum("bqd,bkd->bqk", q, k, precision=prec) / inv_scale_factor[0, 0]
    ref = jnp.einsum("bqk,bkd->bqd", jax.nn.softmax(ref_qk, axis=-1), v, precision=prec)
    assert jnp.allclose(out, ref, atol=5e-2, rtol=5e-2), "mismatch vs reference"

    print("KERNEL_OK")
</pallas_src>

<mosaic_0001>
module attributes {stable_mosaic.version = 11 : i64} {
  func.func @_flash_attn_kernel(%arg0: i32, %arg1: i32, %arg2: i32, %arg3: memref<1x1xf32, #tpu.memory_space<smem>>, %arg4: memref<1x2x512xf32, #tpu.memory_space<vmem>>, %arg5: memref<1x4x512xf32, #tpu.memory_space<vmem>>, %arg6: memref<1x4x512xf32, #tpu.memory_space<vmem>>, %arg7: memref<1x2x512xf32, #tpu.memory_space<vmem>>, %arg8: memref<2x1xf32, #tpu.memory_space<vmem>>, %arg9: memref<2x1xf32, #tpu.memory_space<vmem>>, %arg10: memref<2x512xf32, #tpu.memory_space<vmem>>) attributes {dimension_semantics = [#tpu.dimension_semantics<parallel>, #tpu.dimension_semantics<parallel>, #tpu.dimension_semantics<arbitrary>], iteration_bounds = array<i64: 1, 1, 1>, scalar_prefetch = 0 : i64, scratch_operands = 3 : i64, tpu.core_type = #tpu.core_type<tc>, window_params = [{transform_indices = @transform_0, window_bounds = array<i64: 1, 1>}, {transform_indices = @transform_1, window_bounds = array<i64: 1, 2, 512>}, {transform_indices = @transform_2, window_bounds = array<i64: 1, 4, 512>}, {transform_indices = @transform_3, window_bounds = array<i64: 1, 4, 512>}, {transform_indices = @transform_4, window_bounds = array<i64: 1, 2, 512>}]} {
    %c0_i32 = arith.constant 0 : i32
    %0 = arith.cmpi eq, %arg2, %c0_i32 : i32
    %1 = arith.extui %0 : i1 to i32
    %c0_i32_0 = arith.constant 0 : i32
    %2 = arith.cmpi ne, %1, %c0_i32_0 : i32
    scf.if %2 {
      %cst_29 = arith.constant 0xFF800000 : f32
      %43 = vector.broadcast %cst_29 : f32 to vector<2x1xf32>
      %c0_30 = arith.constant 0 : index
      %c0_31 = arith.constant 0 : index
      %44 = vector.load %arg8[%c0_30, %c0_31] : memref<2x1xf32, #tpu.memory_space<vmem>>, vector<2x1xf32>
      tpu.vector_store %arg8[%c0_30, %c0_31], %43 {strides = array<i32>} : memref<2x1xf32, #tpu.memory_space<vmem>>, vector<2x1xf32>,
      %cst_32 = arith.constant 0.000000e+00 : f32
      %45 = vector.broadcast %cst_32 : f32 to vector<2x1xf32>
      %c0_33 = arith.constant 0 : index
      %c0_34 = arith.constant 0 : index
      %46 = vector.load %arg9[%c0_33, %c0_34] : memref<2x1xf32, #tpu.memory_space<vmem>>, vector<2x1xf32>
      tpu.vector_store %arg9[%c0_33, %c0_34], %45 {strides = array<i32>} : memref<2x1xf32, #tpu.memory_space<vmem>>, vector<2x1xf32>,
      %cst_35 = arith.constant 0.000000e+00 : f32
      %47 = vector.broadcast %cst_35 : f32 to vector<2x512xf32>
      %c0_36 = arith.constant 0 : index
      %c0_37 = arith.constant 0 : index
      %48 = vector.load %arg10[%c0_36, %c0_37] : memref<2x512xf32, #tpu.memory_space<vmem>>, vector<2x512xf32>
      tpu.vector_store %arg10[%c0_36, %c0_37], %47 {strides = array<i32>} : memref<2x512xf32, #tpu.memory_space<vmem>>, vector<2x512xf32>,
    } else {
    }
    %c0 = arith.constant 0 : index
    %c0_1 = arith.constant 0 : index
    %3 = memref.load %arg3[%c0, %c0_1] : memref<1x1xf32, #tpu.memory_space<smem>>
    %cst = arith.constant 1.000000e+00 : f32
    %4 = arith.divf %cst, %3 : f32
    %c0_2 = arith.constant 0 : index
    %c0_3 = arith.constant 0 : index
    %c0_4 = arith.constant 0 : index
    %5 = vector.load %arg4[%c0_2, %c0_3, %c0_4] : memref<1x2x512xf32, #tpu.memory_space<vmem>>, vector<1x2x512xf32>
    %6 = vector.shape_cast %5 : vector<1x2x512xf32> to vector<2x512xf32>
    %7 = vector.broadcast %4 : f32 to vector<2x512xf32>
    %8 = arith.mulf %6, %7 : vector<2x512xf32>
    %9 = arith.truncf %8 : vector<2x512xf32> to vector<2x512xbf16>
    %c0_5 = arith.constant 0 : index
    %c0_6 = arith.constant 0 : index
    %c0_7 = arith.constant 0 : index
    %10 = vector.load %arg5[%c0_5, %c0_6, %c0_7] : memref<1x4x512xf32, #tpu.memory_space<vmem>>, vector<1x4x512xf32>
    %11 = vector.shape_cast %10 : vector<1x4x512xf32> to vector<4x512xf32>
    %12 = arith.truncf %11 : vector<4x512xf32> to vector<4x512xbf16>
    %cst_8 = arith.constant dense<0.000000e+00> : vector<2x4xf32>
    %13 = tpu.matmul %9, %12, %cst_8 {dimension_numbers = #tpu.dot_dimension_numbers<[1], [1], [0], [0], [0, 0, 1, 0], [], []>} : vector<2x512xbf16>, vector<4x512xbf16>, vector<2x4xf32> -> vector<2x4xf32>
    %c0_9 = arith.constant 0 : index
    %c0_10 = arith.constant 0 : index
    %14 = vector.load %arg8[%c0_9, %c0_10] : memref<2x1xf32, #tpu.memory_space<vmem>>, vector<2x1xf32>
    %cst_11 = arith.constant dense<0xFF800000> : vector<2xf32>
    %15 = vector.multi_reduction <maximumf>, %13, %cst_11 [1] : vector<2x4xf32> to vector<2xf32>
    %16 = vector.shape_cast %15 : vector<2xf32> to vector<2x1xf32>
    %17 = arith.maximumf %14, %16 : vector<2x1xf32>
    %18 = arith.subf %14, %17 : vector<2x1xf32>
    %19 = math.exp %18 : vector<2x1xf32>
    %20 = vector.broadcast %17 : vector<2x1xf32> to vector<2x4xf32>
    %21 = arith.subf %13, %20 : vector<2x4xf32>
    %22 = math.exp %21 : vector<2x4xf32>
    %c0_12 = arith.constant 0 : index
    %c0_13 = arith.constant 0 : index
    %23 = vector.load %arg9[%c0_12, %c0_13] : memref<2x1xf32, #tpu.memory_space<vmem>>, vector<2x1xf32>
    %24 = arith.mulf %19, %23 : vector<2x1xf32>
    %cst_14 = arith.constant dense<0.000000e+00> : vector<2xf32>
    %25 = vector.multi_reduction <add>, %22, %cst_14 [1] : vector<2x4xf32> to vector<2xf32>
    %26 = vector.shape_cast %25 : vector<2xf32> to vector<2x1xf32>
    %27 = arith.addf %24, %26 : vector<2x1xf32>
    %c0_15 = arith.constant 0 : index
    %c0_16 = arith.constant 0 : index
    %28 = vector.load %arg9[%c0_15, %c0_16] : memref<2x1xf32, #tpu.memory_space<vmem>>, vector<2x1xf32>
    tpu.vector_store %arg9[%c0_15, %c0_16], %27 {strides = array<i32>} : memref<2x1xf32, #tpu.memory_space<vmem>>, vector<2x1xf32>,
    %c0_17 = arith.constant 0 : index
    %c0_18 = arith.constant 0 : index
    %29 = vector.load %arg10[%c0_17, %c0_18] : memref<2x512xf32, #tpu.memory_space<vmem>>, vector<2x512xf32>
    %30 = vector.broadcast %19 : vector<2x1xf32> to vector<2x512xf32>
    %31 = arith.mulf %30, %29 : vector<2x512xf32>
    %32 = arith.truncf %22 : vector<2x4xf32> to vector<2x4xbf16>
    %c0_19 = arith.constant 0 : index
    %c0_20 = arith.constant 0 : index
    %c0_21 = arith.constant 0 : index
    %33 = vector.load %arg6[%c0_19, %c0_20, %c0_21] : memref<1x4x512xf32, #tpu.memory_space<vmem>>, vector<1x4x512xf32>
    %34 = vector.shape_cast %33 : vector<1x4x512xf32> to vector<4x512xf32>
    %35 = arith.truncf %34 : vector<4x512xf32> to vector<4x512xbf16>
    %cst_22 = arith.constant dense<0.000000e+00> : vector<2x512xf32>
    %36 = tpu.matmul %32, %35, %cst_22 {dimension_numbers = #tpu.dot_dimension_numbers<[1], [0], [0], [1], [0, 0, 1, 1], [], []>} : vector<2x4xbf16>, vector<4x512xbf16>, vector<2x512xf32> -> vector<2x512xf32>
    %37 = arith.addf %31, %36 : vector<2x512xf32>
    %c0_23 = arith.constant 0 : index
    %c0_24 = arith.constant 0 : index
    %38 = vector.load %arg10[%c0_23, %c0_24] : memref<2x512xf32, #tpu.memory_space<vmem>>, vector<2x512xf32>
    tpu.vector_store %arg10[%c0_23, %c0_24], %37 {strides = array<i32>} : memref<2x512xf32, #tpu.memory_space<vmem>>, vector<2x512xf32>,
    %c0_25 = arith.constant 0 : index
    %c0_26 = arith.constant 0 : index
    %39 = vector.load %arg8[%c0_25, %c0_26] : memref<2x1xf32, #tpu.memory_space<vmem>>, vector<2x1xf32>
    tpu.vector_store %arg8[%c0_25, %c0_26], %17 {strides = array<i32>} : memref<2x1xf32, #tpu.memory_space<vmem>>, vector<2x1xf32>,
    %c0_i32_27 = arith.constant 0 : i32
    %40 = arith.cmpi eq, %arg2, %c0_i32_27 : i32
    %41 = arith.extui %40 : i1 to i32
    %c0_i32_28 = arith.constant 0 : i32
    %42 = arith.cmpi ne, %41, %c0_i32_28 : i32
    scf.if %42 {
      %c0_29 = arith.constant 0 : index
      %c0_30 = arith.constant 0 : index
      %43 = vector.load %arg10[%c0_29, %c0_30] : memref<2x512xf32, #tpu.memory_space<vmem>>, vector<2x512xf32>
      %c0_31 = arith.constant 0 : index
      %c0_32 = arith.constant 0 : index
      %44 = vector.load %arg9[%c0_31, %c0_32] : memref<2x1xf32, #tpu.memory_space<vmem>>, vector<2x1xf32>
      %45 = tpu.reciprocal %44 {approx = true} : vector<2x1xf32> -> vector<2x1xf32>
      %46 = vector.broadcast %45 : vector<2x1xf32> to vector<2x512xf32>
      %47 = arith.mulf %43, %46 : vector<2x512xf32>
      %c0_33 = arith.constant 0 : index
      %c0_34 = arith.constant 0 : index
      %c0_35 = arith.constant 0 : index
      %48 = vector.load %arg7[%c0_33, %c0_34, %c0_35] : memref<1x2x512xf32, #tpu.memory_space<vmem>>, vector<1x2x512xf32>
      %49 = vector.shape_cast %48 : vector<1x2x512xf32> to vector<2x512xf32>
      %50 = vector.shape_cast %47 : vector<2x512xf32> to vector<1x2x512xf32>
      tpu.vector_store %arg7[%c0_33, %c0_34, %c0_35], %50 {strides = array<i32>} : memref<1x2x512xf32, #tpu.memory_space<vmem>>, vector<1x2x512xf32>,
    } else {
    }
    return
  }
  func.func @transform_0(%arg0: i32, %arg1: i32, %arg2: i32) -> (i32, i32) {
    %c0_i32 = arith.constant 0 : i32
    %c0_i32_0 = arith.constant 0 : i32
    %c0_i32_1 = arith.constant 0 : i32
    return %c0_i32, %c0_i32_0 : i32, i32
  }
  func.func @transform_1(%arg0: i32, %arg1: i32, %arg2: i32) -> (i32, i32, i32) {
    %c0_i32 = arith.constant 0 : i32
    %c0_i32_0 = arith.constant 0 : i32
    return %arg0, %arg1, %c0_i32 : i32, i32, i32
  }
  func.func @transform_2(%arg0: i32, %arg1: i32, %arg2: i32) -> (i32, i32, i32) {
    %c0_i32 = arith.constant 0 : i32
    %c0_i32_0 = arith.constant 0 : i32
    return %arg0, %arg2, %c0_i32 : i32, i32, i32
  }
  func.func @transform_3(%arg0: i32, %arg1: i32, %arg2: i32) -> (i32, i32, i32) {
    %c0_i32 = arith.constant 0 : i32
    %c0_i32_0 = arith.constant 0 : i32
    return %arg0, %arg2, %c0_i32 : i32, i32, i32
  }
  func.func @transform_4(%arg0: i32, %arg1: i32, %arg2: i32) -> (i32, i32, i32) {
    %c0_i32 = arith.constant 0 : i32
    %c0_i32_0 = arith.constant 0 : i32
    return %arg0, %arg1, %c0_i32 : i32, i32, i32
  }
}

</mosaic_0001>

<llo_original>
// kernel: tpu_custom_call.1
$region0: #{tpu_custom_call.1}
  #allocation0 [shape = 'u32[]', space=smem, size = 0x4, offset = 0x4, fixed_abs, tag = 'smem constant byte address 0x4 - core index']
  #allocation1 [shape = 'u32[144,128]{1,0:T(1,128)}', space=vmem, size = 0x12000, scoped, tag = 'internal scratch']
  #allocation2 [shape = 'f32[2,1]{1,0:T(2,128)}', space=vmem, size = 0x400, scoped, tag = 'scratch operand']
  #allocation3 [shape = 'f32[2,1]{1,0:T(2,128)}', space=vmem, size = 0x400, scoped, tag = 'scratch operand']
  #allocation4 [shape = 'f32[2,512]{1,0:T(2,128)}', space=vmem, size = 0x1000, scoped, tag = 'scratch operand']
  #allocation5 [shape = 'f32[1,1]{1,0:T(1,128)S(6)}', space=smem, size = 0x200, scoped, tag = 'scoped memory for tpu_custom_call.1']
  %s0 = inlined_call_operand.<no memory space> [shape: f32[1,1], index: 0, kind: input, shape index: {}]
  %s1 = inlined_call_operand.hbm [shape: f32[1,2,512], index: 1, kind: input, shape index: {}]
  %s2 = inlined_call_operand.hbm [shape: f32[1,4,512], index: 2, kind: input, shape index: {}]
  %s3 = inlined_call_operand.hbm [shape: f32[1,4,512], index: 3, kind: input, shape index: {}]
  %s4 = inlined_call_operand.hbm [shape: f32[1,2,512], index: 4, kind: output, shape index: {}]
  %s5 = sld [smem:[#allocation0]]
  $region46: #{tpu_custom_call.1} parent=0
    _
  %s7 = ssub.s32 1, %s5
  %s8 = scalar_select 0, %s7, %s5
  %9 = sst [smem:[#allocation5]] %s0
  $region1: #{tpu_custom_call.1} parent=0
    #allocation6 [shape = 'u8[4096]{0}', space=vmem, size = 0x1000, scoped, tag = 'input window, operand 1, single buffered']
    #allocation7 [shape = 's32[1]{0}', space=sflag, size = 0x4, scoped, tag = 'scoped memory for tpu_custom_call.1']
    #allocation8 [shape = 's32[1]{0}', space=sflag, size = 0x4, scoped, tag = 'scoped memory for tpu_custom_call.1']
    #allocation9 [shape = 'u8[8192]{0}', space=vmem, size = 0x2000, scoped, tag = 'input window, operand 2, single buffered']
    #allocation10 [shape = 's32[1]{0}', space=sflag, size = 0x4, scoped, tag = 'scoped memory for tpu_custom_call.1']
    #allocation11 [shape = 'u8[8192]{0}', space=vmem, size = 0x2000, scoped, tag = 'input window, operand 3, single buffered']
    #allocation12 [shape = 'u8[4096]{0}', space=vmem, size = 0x1000, scoped, tag = 'output window, operand 0, single buffered']
    %10 = vsyncpa [#allocation7], 0
    %11 = vsyncpa [#allocation10], 0
    %12 = vsyncpa [#allocation8], 0
    // Predicated region
    $region2: #{tpu_custom_call.1} parent=1 // pred_check
      _
    $region3: #{tpu_custom_call.1} parent=1 // pred_check_branch
      %14 = sbr.rel (0) target = $region5
    $region4: #{tpu_custom_call.1} parent=1 // pred_region
      _
    $region5: #{tpu_custom_call.1} parent=1 // pred_fallthru
      _
    // Predicated region
    $region6: #{tpu_custom_call.1} parent=1 // pred_check
      _
    $region7: #{tpu_custom_call.1} parent=1 // pred_check_branch
      %16 = sbr.rel (0) target = $region9
    $region8: #{tpu_custom_call.1} parent=1 // pred_region
      %s18 = ssub.s32 128, 128
      %19 = vsyncadd [#allocation7], %s18
      %s21 = sshll.u32 [#allocation6], 4
      %s22 = int_to_ptr.vmem [resolvable:$true] %s21
      %24 = dma.hbm_to_vmem [thread:$0]  %s1, 128, %s22, [#allocation7]
    $region9: #{tpu_custom_call.1} parent=1 // pred_fallthru
      _
    // Predicated region
    $region10: #{tpu_custom_call.1} parent=1 // pred_check
      _
    $region11: #{tpu_custom_call.1} parent=1 // pred_check_branch
      %26 = sbr.rel (0) target = $region13
    $region12: #{tpu_custom_call.1} parent=1 // pred_region
      %s28 = ssub.s32 256, 256
      %29 = vsyncadd [#allocation10], %s28
      %s31 = sshll.u32 [#allocation9], 4
      %s32 = int_to_ptr.vmem [resolvable:$true] %s31
      %34 = dma.hbm_to_vmem [thread:$0]  %s2, 256, %s32, [#allocation10]
    $region13: #{tpu_custom_call.1} parent=1 // pred_fallthru
      _
    // Predicated region
    $region14: #{tpu_custom_call.1} parent=1 // pred_check
      _
    $region15: #{tpu_custom_call.1} parent=1 // pred_check_branch
      %36 = sbr.rel (0) target = $region17
    $region16: #{tpu_custom_call.1} parent=1 // pred_region
      %s38 = ssub.s32 256, 256
      %39 = vsyncadd [#allocation10], %s38
      %s41 = sshll.u32 [#allocation11], 4
      %s42 = int_to_ptr.vmem [resolvable:$true] %s41
      %44 = dma.hbm_to_vmem [thread:$0]  %s3, 256, %s42, [#allocation10]
    $region17: #{tpu_custom_call.1} parent=1 // pred_fallthru
      _
    // Predicated region
    $region18: #{tpu_custom_call.1} parent=1 // pred_check
      _
    $region19: #{tpu_custom_call.1} parent=1 // pred_check_branch
      %46 = sbr.rel (0) target = $region21
    $region20: #{tpu_custom_call.1} parent=1 // pred_region
      %47 = dma.done [#allocation7], 128
    $region21: #{tpu_custom_call.1} parent=1 // pred_fallthru
      _
    // Predicated region
    $region22: #{tpu_custom_call.1} parent=1 // pred_check
      _
    $region23: #{tpu_custom_call.1} parent=1 // pred_check_branch
      %49 = sbr.rel (0) target = $region25
    $region24: #{tpu_custom_call.1} parent=1 // pred_region
      %50 = dma.done [#allocation10], 256
    $region25: #{tpu_custom_call.1} parent=1 // pred_fallthru
      _
    // Predicated region
    $region26: #{tpu_custom_call.1} parent=1 // pred_check
      _
    $region27: #{tpu_custom_call.1} parent=1 // pred_check_branch
      %52 = sbr.rel (0) target = $region29
    $region28: #{tpu_custom_call.1} parent=1 // pred_region
      %53 = dma.done [#allocation10], 256
    $region29: #{tpu_custom_call.1} parent=1 // pred_fallthru
      _
    %p55 = scmp.eq.s32.totalorder 0, 0
    // Predicated region
    $region30: #{tpu_custom_call.1} parent=1 // pred_check
      %p56 = pneg %p55
    $region31: #{tpu_custom_call.1} parent=1 // pred_check_branch
      %58 = sbr.rel (%p56) target = $region33
    $region32: #{tpu_custom_call.1} parent=1 // pred_region
      %vm59 = vcmask 1024
      %60 = vst.msk [vmem:[#allocation2] sm:$0x3] %vm59, -inf
      %61 = vst.msk [vmem:[#allocation3] sm:$0x3] %vm59, 0.0
      %62 = vst [vmem:[#allocation4] sm:$0xff] 0.0
    $region33: #{tpu_custom_call.1} parent=1 // pred_fallthru
      _
    %s63 = sld [smem:[#allocation5]]
    %v64 = vstv %s63
    %v65 = vrcp.pop %v64
    %s66 = vtos %v65
    %v67 = vld [vmem:[#allocation6] sm:$0xff]
    %v68 = vstv %s66
    %v69 = vmul.f32 %v67, %v68
    %v71 = vcombine.high %v69, %v69
    %v73 = vunpack.c.l.s4 1983009808
    %v74 = vunpack.c.0.s8 %v73
    %v75 = vlaneseq
    %v76 = vshrl.u32 %v75, 7
    %v77 = vsub.s32 %v74, %v76
    %v78 = vrot.slane %v69, %v77
    %v80 = vunpack.c.l.s4 1983009808
    %v81 = vunpack.c.0.s8 %v80
    %v82 = vlaneseq
    %v83 = vshrl.u32 %v82, 7
    %v84 = vsub.s32 %v81, %v83
    %v85 = vrot.slane %v71, %v84
    %v86 = vcombine.high %v78, %v78
    %v87 = vcombine.high %v85, %v85
    %v92 = vpack.c.bf16 %v78, %v78
    %v93 = vpack.c.bf16 %v86, %v86
    %v94 = vpack.c.bf16 %v85, %v85
    %v95 = vpack.c.bf16 %v87, %v87
    %v96 = vld [vmem:[#allocation9] sm:$0xff]
    %v97 = vld [vmem:[#allocation9 + $0x8] sm:$0xff]
    %v100 = vcombine.high %v96, %v96
    %v101 = vcombine.high %v97, %v97
    %v104 = vpack.c.bf16 %v96, %v96
    %v105 = vpack.c.bf16 %v100, %v100
    %v106 = vpack.c.bf16 %v97, %v97
    %v107 = vpack.c.bf16 %v101, %v101
    %108 = vmatprep.subr.bf16.mxu0 %v105
    %109 = vmatpush1.bf16.xpose.msra.mxu0 %v104
    %110 = vmatprep.subr.bf16.mxu0 0
    %111 = vmatpush1.bf16.xpose.msra.mxu0 0
    %112 = vmatprep.subr.bf16.mxu0 0
    %113 = vmatpush1.bf16.xpose.msra.mxu0 0
    %114 = vmatprep.subr.bf16.mxu0 0
    %115 = vmatpush1.bf16.xpose.msra.mxu0 0
    %116 = vmatprep.subr.bf16.mxu0 0
    %117 = vmatpush1.bf16.xpose.msra.mxu0 0
    %118 = vmatprep.subr.bf16.mxu0 0
    %119 = vmatpush1.bf16.xpose.msra.mxu0 0
    %120 = vmatprep.subr.bf16.mxu0 0
    %121 = vmatpush1.bf16.xpose.msra.mxu0 0
    %122 = vmatprep.subr.bf16.mxu0 0
    %123 = vmatpush1.bf16.xpose.msra.mxu0 0
    %124 = vmatprep.subr.bf16.mxu0 0
    %125 = vmatpush1.bf16.xpose.msra.mxu0 0
    %126 = vmatprep.subr.bf16.mxu0 0
    %127 = vmatpush1.bf16.xpose.msra.mxu0 0
    %128 = vmatprep.subr.bf16.mxu0 0
    %129 = vmatpush1.bf16.xpose.msra.mxu0 0
    %130 = vmatprep.subr.bf16.mxu0 0
    %131 = vmatpush1.bf16.xpose.msra.mxu0 0
    %132 = vmatprep.subr.bf16.mxu0 0
    %133 = vmatpush1.bf16.xpose.msra.mxu0 0
    %134 = vmatprep.subr.bf16.mxu0 0
    %135 = vmatpush1.bf16.xpose.msra.mxu0 0
    %136 = vmatprep.subr.bf16.mxu0 0
    %137 = vmatpush1.bf16.xpose.msra.mxu0 0
    %138 = vmatprep.subr.bf16.mxu0 0
    %139 = vmatpush1.bf16.xpose.msra.mxu0 0
    %140 = vmatprep.mubr.bf16.mxu0 %v93
    %141 = vmatmul.mubr.bf16.gmra.mrb[0].mxu0 %v92
    %v142 = vpop.f32.mrb[0].mxu0
    %v143 = vadd.f32 0.0, %v142
    %v144 = vpop.f32.mrb[0].mxu0
    %v145 = vpop.f32.mrb[0].mxu0
    %v146 = vpop.f32.mrb[0].mxu0
    %147 = vdwg.mxu0
    %148 = vmatprep.subr.bf16.mxu0 %v107
    %149 = vmatpush1.bf16.xpose.msra.mxu0 %v106
    %150 = vmatprep.subr.bf16.mxu0 0
    %151 = vmatpush1.bf16.xpose.msra.mxu0 0
    %152 = vmatprep.subr.bf16.mxu0 0
    %153 = vmatpush1.bf16.xpose.msra.mxu0 0
    %154 = vmatprep.subr.bf16.mxu0 0
    %155 = vmatpush1.bf16.xpose.msra.mxu0 0
    %156 = vmatprep.subr.bf16.mxu0 0
    %157 = vmatpush1.bf16.xpose.msra.mxu0 0
    %158 = vmatprep.subr.bf16.mxu0 0
    %159 = vmatpush1.bf16.xpose.msra.mxu0 0
    %160 = vmatprep.subr.bf16.mxu0 0
    %161 = vmatpush1.bf16.xpose.msra.mxu0 0
    %162 = vmatprep.subr.bf16.mxu0 0
    %163 = vmatpush1.bf16.xpose.msra.mxu0 0
    %164 = vmatprep.subr.bf16.mxu0 0
    %165 = vmatpush1.bf16.xpose.msra.mxu0 0
    %166 = vmatprep.subr.bf16.mxu0 0
    %167 = vmatpush1.bf16.xpose.msra.mxu0 0
    %168 = vmatprep.subr.bf16.mxu0 0
    %169 = vmatpush1.bf16.xpose.msra.mxu0 0
    %170 = vmatprep.subr.bf16.mxu0 0
    %171 = vmatpush1.bf16.xpose.msra.mxu0 0
    %172 = vmatprep.subr.bf16.mxu0 0
    %173 = vmatpush1.bf16.xpose.msra.mxu0 0
    %174 = vmatprep.subr.bf16.mxu0 0
    %175 = vmatpush1.bf16.xpose.msra.mxu0 0
    %176 = vmatprep.subr.bf16.mxu0 0
    %177 = vmatpush1.bf16.xpose.msra.mxu0 0
    %178 = vmatprep.subr.bf16.mxu0 0
    %179 = vmatpush1.bf16.xpose.msra.mxu0 0
    %180 = vmatprep.mubr.bf16.mxu0 %v95
    %181 = vmatmul.mubr.bf16.gmra.mrb[0].mxu0 %v94
    %v182 = vpop.f32.mrb[0].mxu0
    %v183 = vadd.f32 %v143, %v182
    %v184 = vpop.f32.mrb[0].mxu0
    %v185 = vpop.f32.mrb[0].mxu0
    %v186 = vpop.f32.mrb[0].mxu0
    %187 = vdwg.mxu0
    %v188 = vld [vmem:[#allocation2] sm:$0x3]
    %vm189 = vcmask 25600
    %v190 = vsel %vm189, %v183, -inf
    %191 = vmax.xlane.f32.xlu0 %v190
    %v192 = vpop.xlane.xlu0 %191
    %v193 = vmax.f32 %v188, %v192
    %v194 = vsub.f32 %v188, %v193
    %v195 = vmul.f32 %v194, 1.442695
    %v196 = vpow.pop %v195
    %198 = vset.pattern.permute.xlu0 0
    %199 = vperm.xlu0 %198, %v193
    %v200 = vpop.permute.xlu0 %199
    %v202 = vsub.f32 %v183, %v200
    %v203 = vmul.f32 %v202, 1.442695
    %v204 = vpow.pop %v203
    %v205 = vld [vmem:[#allocation3] sm:$0x3]
    %v206 = vmul.f32 %v196, %v205
    %v207 = vsel %vm189, %v204, 0.0
    %208 = vadd.xlane.f32.xlu0 %v207
    %v209 = vpop.xlane.xlu0 %208
    %v210 = vadd.f32 %v206, %v209
    %vm211 = vcmask 1024
    %212 = vst.msk [vmem:[#allocation3] sm:$0x3] %vm211, %v210
    %v213 = vld [vmem:[#allocation4] sm:$0xff]
    %215 = vset.pattern.permute.xlu0 0
    %216 = vperm.xlu0 %215, %v196
    %v217 = vpop.permute.xlu0 %216
    %v220 = vcombine.high %v213, %v213
    %v222 = vunpack.c.l.s4 1983009808
    %v223 = vunpack.c.0.s8 %v222
    %v224 = vlaneseq
    %v225 = vshrl.u32 %v224, 7
    %v226 = vsub.s32 %v223, %v225
    %v227 = vrot.slane %v213, %v226
    %v229 = vunpack.c.l.s4 1983009808
    %v230 = vunpack.c.0.s8 %v229
    %v231 = vlaneseq
    %v232 = vshrl.u32 %v231, 7
    %v233 = vsub.s32 %v230, %v232
    %v234 = vrot.slane %v220, %v233
    %v235 = vcombine.high %v227, %v227
    %v236 = vcombine.high %v234, %v234
    %v241 = vmul.f32 %v217, %v227
    %v242 = vmul.f32 %v217, %v235
    %v243 = vmul.f32 %v217, %v234
    %v244 = vmul.f32 %v217, %v236
    %v245 = vpack.c.bf16 %v204, %v204
    %v246 = vld [vmem:[#allocation11] sm:$0xff]
    %v247 = vld [vmem:[#allocation11 + $0x8] sm:$0xff]
    %v250 = vcombine.high %v246, %v246
    %v251 = vcombine.high %v247, %v247
    %v254 = vpack.c.bf16 %v246, %v246
    %v255 = vpack.c.bf16 %v250, %v250
    %v256 = vpack.c.bf16 %v247, %v247
    %v257 = vpack.c.bf16 %v251, %v251
    %vm258 = vcmask 31744
    %v260 = vsel %vm258, %v245, 0
    %vm262 = vcmask 1041408
    %v264 = vsel %vm262, %v254, 0
    %v267 = vsel %vm262, %v255, 0
    %v270 = vsel %vm262, %v256, 0
    %v273 = vsel %vm262, %v257, 0
    %275 = vmatprep.subr.bf16.mxu0 %v267
    %276 = vmatpush1.bf16.msra.mxu0 %v264
    %277 = vmatprep.subr.bf16.mxu0 0
    %278 = vmatpush1.bf16.msra.mxu0 0
    %279 = vmatprep.subr.bf16.mxu0 0
    %280 = vmatpush1.bf16.msra.mxu0 0
    %281 = vmatprep.subr.bf16.mxu0 0
    %282 = vmatpush1.bf16.msra.mxu0 0
    %283 = vmatprep.subr.bf16.mxu0 0
    %284 = vmatpush1.bf16.msra.mxu0 0
    %285 = vmatprep.subr.bf16.mxu0 0
    %286 = vmatpush1.bf16.msra.mxu0 0
    %287 = vmatprep.subr.bf16.mxu0 0
    %288 = vmatpush1.bf16.msra.mxu0 0
    %289 = vmatprep.subr.bf16.mxu0 0
    %290 = vmatpush1.bf16.msra.mxu0 0
    %291 = vmatprep.subr.bf16.mxu0 0
    %292 = vmatpush1.bf16.msra.mxu0 0
    %293 = vmatprep.subr.bf16.mxu0 0
    %294 = vmatpush1.bf16.msra.mxu0 0
    %295 = vmatprep.subr.bf16.mxu0 0
    %296 = vmatpush1.bf16.msra.mxu0 0
    %297 = vmatprep.subr.bf16.mxu0 0
    %298 = vmatpush1.bf16.msra.mxu0 0
    %299 = vmatprep.subr.bf16.mxu0 0
    %300 = vmatpush1.bf16.msra.mxu0 0
    %301 = vmatprep.subr.bf16.mxu0 0
    %302 = vmatpush1.bf16.msra.mxu0 0
    %303 = vmatprep.subr.bf16.mxu0 0
    %304 = vmatpush1.bf16.msra.mxu0 0
    %305 = vmatprep.subr.bf16.mxu0 0
    %306 = vmatpush1.bf16.msra.mxu0 0
    %307 = vmatprep.mubr.bf16.mxu0 0
    %308 = vmatmul.mubr.bf16.gmra.mrb[0].mxu0 %v260
    %v309 = vpop.f32.mrb[0].mxu0
    %v310 = vadd.f32 0.0, %v309
    %v311 = vpop.f32.mrb[0].mxu0
    %v312 = vadd.f32 0.0, %v311
    %v313 = vpop.f32.mrb[0].mxu0
    %v314 = vpop.f32.mrb[0].mxu0
    %315 = vdwg.mxu0
    %316 = vmatprep.subr.bf16.mxu0 %v273
    %317 = vmatpush1.bf16.msra.mxu0 %v270
    %318 = vmatprep.subr.bf16.mxu0 0
    %319 = vmatpush1.bf16.msra.mxu0 0
    %320 = vmatprep.subr.bf16.mxu0 0
    %321 = vmatpush1.bf16.msra.mxu0 0
    %322 = vmatprep.subr.bf16.mxu0 0
    %323 = vmatpush1.bf16.msra.mxu0 0
    %324 = vmatprep.subr.bf16.mxu0 0
    %325 = vmatpush1.bf16.msra.mxu0 0
    %326 = vmatprep.subr.bf16.mxu0 0
    %327 = vmatpush1.bf16.msra.mxu0 0
    %328 = vmatprep.subr.bf16.mxu0 0
    %329 = vmatpush1.bf16.msra.mxu0 0
    %330 = vmatprep.subr.bf16.mxu0 0
    %331 = vmatpush1.bf16.msra.mxu0 0
    %332 = vmatprep.subr.bf16.mxu0 0
    %333 = vmatpush1.bf16.msra.mxu0 0
    %334 = vmatprep.subr.bf16.mxu0 0
    %335 = vmatpush1.bf16.msra.mxu0 0
    %336 = vmatprep.subr.bf16.mxu0 0
    %337 = vmatpush1.bf16.msra.mxu0 0
    %338 = vmatprep.subr.bf16.mxu0 0
    %339 = vmatpush1.bf16.msra.mxu0 0
    %340 = vmatprep.subr.bf16.mxu0 0
    %341 = vmatpush1.bf16.msra.mxu0 0
    %342 = vmatprep.subr.bf16.mxu0 0
    %343 = vmatpush1.bf16.msra.mxu0 0
    %344 = vmatprep.subr.bf16.mxu0 0
    %345 = vmatpush1.bf16.msra.mxu0 0
    %346 = vmatprep.subr.bf16.mxu0 0
    %347 = vmatpush1.bf16.msra.mxu0 0
    %348 = vmatprep.mubr.bf16.mxu0 0
    %349 = vmatmul.mubr.bf16.gmra.mrb[0].mxu0 %v260
    %v350 = vpop.f32.mrb[0].mxu0
    %v351 = vadd.f32 0.0, %v350
    %v352 = vpop.f32.mrb[0].mxu0
    %v353 = vadd.f32 0.0, %v352
    %v354 = vpop.f32.mrb[0].mxu0
    %v355 = vpop.f32.mrb[0].mxu0
    %356 = vdwg.mxu0
    %v357 = vadd.f32 %v241, %v310
    %v358 = vadd.f32 %v242, %v312
    %v359 = vadd.f32 %v243, %v351
    %v360 = vadd.f32 %v244, %v353
    %v365 = vcombine.low %v357, %v358
    %v366 = vcombine.low %v359, %v360
    %v368 = vunpack.c.l.s4 1983009808
    %v369 = vunpack.c.0.s8 %v368
    %v370 = vlaneseq
    %v371 = vshrl.u32 %v370, 7
    %v372 = vsub.s32 %v369, %v371
    %v373 = vrot.slane %v365, %v372
    %v375 = vunpack.c.l.s4 1983009808
    %v376 = vunpack.c.0.s8 %v375
    %v377 = vlaneseq
    %v378 = vshrl.u32 %v377, 7
    %v379 = vsub.s32 %v376, %v378
    %v380 = vrot.slane %v366, %v379
    %v381 = vcombine.low %v373, %v380
    %383 = vst [vmem:[#allocation4] sm:$0xff] %v381
    %384 = vst.msk [vmem:[#allocation2] sm:$0x3] %vm211, %v193
    // Predicated region
    $region34: #{tpu_custom_call.1} parent=1 // pred_check
      %p385 = pneg %p55
    $region35: #{tpu_custom_call.1} parent=1 // pred_check_branch
      %387 = sbr.rel (%p385) target = $region37
    $region36: #{tpu_custom_call.1} parent=1 // pred_region
      %v388 = vld [vmem:[#allocation4] sm:$0xff]
      %v389 = vld [vmem:[#allocation3] sm:$0x3]
      %v390 = vrcp.pop %v389
      %392 = vset.pattern.permute.xlu0 0
      %393 = vperm.xlu0 %392, %v390
      %v394 = vpop.permute.xlu0 %393
      %v396 = vunpack.c.l.s4 269488144
      %v397 = vunpack.c.0.s8 %v396
      %v398 = vlaneseq
      %v399 = vshrl.u32 %v398, 7
      %v400 = vsub.s32 %v397, %v399
      %v401 = vrot.slane %v394, %v400
      %v403 = vmul.f32 %v388, %v401
      %404 = vst [vmem:[#allocation12] sm:$0xff] %v403
    $region37: #{tpu_custom_call.1} parent=1 // pred_fallthru
      _
    // Predicated region
    $region38: #{tpu_custom_call.1} parent=1 // pred_check
      _
    $region39: #{tpu_custom_call.1} parent=1 // pred_check_branch
      %406 = sbr.rel (0) target = $region41
    $region40: #{tpu_custom_call.1} parent=1 // pred_region
      %s408 = ssub.s32 128, 128
      %409 = vsyncadd [#allocation8], %s408
      %s411 = sshll.u32 [#allocation12], 4
      %s412 = int_to_ptr.vmem [resolvable:$true] %s411
      %414 = dma.vmem_to_hbm [thread:$0]  %s412, 128, %s4, [#allocation8]
    $region41: #{tpu_custom_call.1} parent=1 // pred_fallthru
      _
    // Predicated region
    $region42: #{tpu_custom_call.1} parent=1 // pred_check
      _
    $region43: #{tpu_custom_call.1} parent=1 // pred_check_branch
      %416 = sbr.rel (0) target = $region45
    $region44: #{tpu_custom_call.1} parent=1 // pred_region
      %417 = dma.done [#allocation8], 128
    $region45: #{tpu_custom_call.1} parent=1 // pred_fallthru
      _
    %418 = vsyncpa [#allocation7], 1
    %419 = vsyncpa [#allocation10], 1
    %420 = vsyncpa [#allocation8], 1

</llo_original>
